<compile_context>
chip_gen: v5e
topology: v5e:2x2
jax: 0.10.0
libtpu: 0.0.40
codegen_flags: <defaults>
</compile_context>

<pallas_src>
import numpy as np
import jax
import jax.numpy as jnp
from jax.experimental import pallas as pl
from jax.experimental.pallas import tpu as pltpu

LANE = 128


# --------------------------------------------------------------------------
# Constant-matrix construction (numpy, trace time)
# --------------------------------------------------------------------------
def _gaussian_kernel1d(ksize: int, sigma: float) -> np.ndarray:
    # Matches kornia.filters.get_gaussian_kernel1d (normalized).
    x = np.arange(ksize, dtype=np.float64) - (ksize - 1) / 2.0
    g = np.exp(-(x ** 2) / (2.0 * sigma ** 2))
    return g / g.sum()


def _reflect_blur_matrix(n: int, w1d: np.ndarray) -> np.ndarray:
    """(n, n) matrix B such that B @ v == 1-D Gaussian blur of v with
    reflect ('reflect', no edge repeat) boundary handling baked in."""
    K = len(w1d)
    pad = K // 2
    assert pad < n, "reflect padding requires dim > kernel//2"
    B = np.zeros((n, n), np.float64)
    for i in range(n):
        for k in range(K):
            j = i + k - pad
            if j < 0:
                j = -j
            elif j >= n:
                j = 2 * (n - 1) - j
            B[i, j] += w1d[k]
    return B


# --------------------------------------------------------------------------
# Kernels
# --------------------------------------------------------------------------
def _make_dense_kernel(Rc: int):
    """Lane-dense path: per-channel plane folded to (Rc, 128); full 2-D blur
    (both passes + reflect) is M = kron(A_h, A_w), applied as Rc*Rc dense
    128x128 block matmuls on the MXU."""

    def kernel(mask_ref, m_ref, x_ref, o_ref):
        b = pl.program_id(0)
        sel = mask_ref[b]                      # int32 scalar from SMEM

        @pl.when(sel == 0)
        def _():
            # No blur for this batch element: dense block copy only.
            o_ref[...] = x_ref[...]

        @pl.when(sel != 0)
        def _():
            x = x_ref[0].astype(jnp.float32)   # (C, Rc, 128)
            for i in range(Rc):
                acc = jnp.dot(x[:, 0, :], m_ref[i, 0],
                              preferred_element_type=jnp.float32)
                for j in range(1, Rc):
                    acc = acc + jnp.dot(x[:, j, :], m_ref[i, j],
                                        preferred_element_type=jnp.float32)
                o_ref[0, :, i, :] = acc.astype(o_ref.dtype)   # dense 128-lane store

    return kernel


def _make_separable_kernel(c_blk: int):
    """General path: per channel, out = A_h @ X @ A_w^T (reflect baked into
    the banded matrices).  Plain 2-D matmuls only."""

    def kernel(mask_ref, ah_ref, awt_ref, x_ref, o_ref):
        b = pl.program_id(0)
        sel = mask_ref[b]

        @pl.when(sel == 0)
        def _():
            o_ref[...] = x_ref[...]

        @pl.when(sel != 0)
        def _():
            ah = ah_ref[...]                   # (H, H)
            awt = awt_ref[...]                 # (W, W) == A_w^T
            for c in range(c_blk):
                xc = x_ref[0, c].astype(jnp.float32)           # (H, W)
                t = jnp.dot(xc, awt, preferred_element_type=jnp.float32)
                y = jnp.dot(ah, t, preferred_element_type=jnp.float32)
                o_ref[0, c] = y.astype(o_ref.dtype)

    return kernel


# --------------------------------------------------------------------------
# Wrapper
# --------------------------------------------------------------------------
def jit_gaussian_blur(images: jax.Array, key: jax.Array,
                      kernel_hw: int = 5, sigma: float = 1.0,
                      p: float = 0.5) -> jax.Array:
    """JAX/Pallas equivalent of _JITGaussianBlur.forward (NCHW)."""
    B, C, H, W = images.shape
    assert kernel_hw % 2 == 1, "only odd kernel sizes supported"
    pad = kernel_hw // 2
    assert pad < H and pad < W, "reflect padding requires H, W > kernel//2"

    w1d = _gaussian_kernel1d(kernel_hw, sigma)
    A_h = _reflect_blur_matrix(H, w1d)
    A_w = _reflect_blur_matrix(W, w1d)

    # Per-batch bernoulli(p) choice, like `th.rand(batch) < p`.
    should_blur = (jax.random.uniform(key, (B,)) < p).astype(jnp.int32)

    HW = H * W
    use_dense = (HW % LANE == 0) and (HW <= 1024) and (C * HW * 4 <= (2 << 20))

    if use_dense:
        # ---------------- lane-dense folded path -------------------------
        Rc = HW // LANE
        M = np.kron(A_h, A_w)                          # (HW, HW), row-major vec
        M4 = np.empty((Rc, Rc, LANE, LANE), np.float32)
        for i in range(Rc):
            for j in range(Rc):
                # transposed so that (row-vectors) x @ M4[i, j] is correct
                M4[i, j] = M[i * LANE:(i + 1) * LANE,
                             j * LANE:(j + 1) * LANE].T

        xf = images.reshape(B, C, Rc, LANE)            # free reshape (contiguous)
        kernel = _make_dense_kernel(Rc)

        grid_spec = pltpu.PrefetchScalarGridSpec(
            num_scalar_prefetch=1,
            grid=(B,),
            in_specs=[
                pl.BlockSpec((Rc, Rc, LANE, LANE), lambda b, m: (0, 0, 0, 0)),
                pl.BlockSpec((1, C, Rc, LANE), lambda b, m: (b, 0, 0, 0)),
            ],
            out_specs=pl.BlockSpec((1, C, Rc, LANE), lambda b, m: (b, 0, 0, 0)),
        )
        out = pl.pallas_call(
            kernel,
            out_shape=jax.ShapeDtypeStruct((B, C, Rc, LANE), images.dtype),
            grid_spec=grid_spec,
            compiler_params=pltpu.CompilerParams(
                dimension_semantics=("parallel",)),
        )(should_blur, jnp.asarray(M4), xf)
        return out.reshape(B, C, H, W)

    # -------------------- general separable path -------------------------
    # Channel-block tiling: keep each (1, c_blk, H, W) f32 block <= ~2 MiB so
    # double-buffered in+out blocks fit v5e's 16 MiB default scoped VMEM.
    target_bytes = 2 << 20
    c_blk = C
    if C * H * W * 4 > target_bytes:
        c_blk = 1
        for d in range(1, C + 1):
            if C % d == 0 and d * H * W * 4 <= target_bytes:
                c_blk = d
    nc = C // c_blk

    kernel = _make_separable_kernel(c_blk)
    grid_spec = pltpu.PrefetchScalarGridSpec(
        num_scalar_prefetch=1,
        grid=(B, nc),
        in_specs=[
            pl.BlockSpec((H, H), lambda b, c, m: (0, 0)),
            pl.BlockSpec((W, W), lambda b, c, m: (0, 0)),
            pl.BlockSpec((1, c_blk, H, W), lambda b, c, m: (b, c, 0, 0)),
        ],
        out_specs=pl.BlockSpec((1, c_blk, H, W), lambda b, c, m: (b, c, 0, 0)),
    )
    out = pl.pallas_call(
        kernel,
        out_shape=jax.ShapeDtypeStruct((B, C, H, W), images.dtype),
        grid_spec=grid_spec,
        compiler_params=pltpu.CompilerParams(
            dimension_semantics=("parallel", "parallel")),
    )(should_blur,
      jnp.asarray(A_h, jnp.float32),
      jnp.asarray(A_w.T, jnp.float32),
      images)
    return out


# --------------------------------------------------------------------------
# Numpy reference + self-test
# --------------------------------------------------------------------------
def _reference(images, should_blur, kernel_hw=5, sigma=1.0):
    w1d = _gaussian_kernel1d(kernel_hw, sigma)
    B, C, H, W = images.shape
    pad = kernel_hw // 2
    x = np.pad(np.asarray(images, np.float64),
               ((0, 0), (0, 0), (pad, pad), (pad, pad)), mode="reflect")
    tmp = np.zeros((B, C, H + 2 * pad, W), np.float64)
    for k in range(kernel_hw):
        tmp += w1d[k] * x[:, :, :, k:k + W]
    blur = np.zeros((B, C, H, W), np.float64)
    for k in range(kernel_hw):
        blur += w1d[k] * tmp[:, :, k:k + H, :]
    out = np.asarray(images, np.float64).copy()
    for b in range(B):
        if should_blur[b]:
            out[b] = blur[b]
    return out.astype(np.float32)


if __name__ == "__main__":
    key = jax.random.PRNGKey(0)
    k_img, k_blur = jax.random.split(key)

    # Primary shape (exercises the lane-dense folded path: 16*16 == 2*128).
    B, C, H, W = 2, 4, 16, 16
    images = jax.random.normal(k_img, (B, C, H, W), dtype=jnp.float32)
    out = jit_gaussian_blur(images, k_blur, kernel_hw=5, sigma=1.0, p=0.5)
    out = jax.block_until_ready(out)

    should_blur = np.asarray(
        jax.random.uniform(k_blur, (B,)) < 0.5).astype(np.int32)
    ref = _reference(np.asarray(images), should_blur)
    np.testing.assert_allclose(np.asarray(out), ref, rtol=1e-5, atol=1e-5)

    # Also exercise the general separable path (H*W not a multiple of 128).
    B2, C2, H2, W2 = 2, 3, 16, 20
    images2 = jax.random.normal(k_img, (B2, C2, H2, W2), dtype=jnp.float32)
    out2 = jax.block_until_ready(
        jit_gaussian_blur(images2, k_blur, kernel_hw=5, sigma=1.0, p=0.5))
    should_blur2 = np.asarray(
        jax.random.uniform(k_blur, (B2,)) < 0.5).astype(np.int32)
    ref2 = _reference(np.asarray(images2), should_blur2)
    np.testing.assert_allclose(np.asarray(out2), ref2, rtol=1e-5, atol=1e-5)

    print("KERNEL_OK")
</pallas_src>

<mosaic_0001>
module attributes {stable_mosaic.version = 11 : i64} {
  func.func @kernel(%arg0: i32, %arg1: memref<2xi32, #tpu.memory_space<smem>>, %arg2: memref<2x2x128x128xf32, #tpu.memory_space<vmem>>, %arg3: memref<1x4x2x128xf32, #tpu.memory_space<vmem>>, %arg4: memref<1x4x2x128xf32, #tpu.memory_space<vmem>>) attributes {dimension_semantics = [#tpu.dimension_semantics<parallel>], iteration_bounds = array<i64: 2>, scalar_prefetch = 1 : i64, scratch_operands = 0 : i64, tpu.core_type = #tpu.core_type<tc>, window_params = [{pipeline_mode = #tpu.pipeline_mode<synchronous>, transform_indices = @transform_0, window_bounds = array<i64: 2, 2, 128, 128>}, {transform_indices = @transform_1, window_bounds = array<i64: 1, 4, 2, 128>}, {transform_indices = @transform_2, window_bounds = array<i64: 1, 4, 2, 128>}]} {
    %0 = arith.index_cast %arg0 : i32 to index
    %1 = memref.load %arg1[%0] : memref<2xi32, #tpu.memory_space<smem>>
    %c0_i32 = arith.constant 0 : i32
    %2 = arith.cmpi eq, %1, %c0_i32 : i32
    %3 = arith.extui %2 : i1 to i32
    %c0_i32_0 = arith.constant 0 : i32
    %4 = arith.cmpi ne, %3, %c0_i32_0 : i32
    scf.if %4 {
      %c0 = arith.constant 0 : index
      %c0_3 = arith.constant 0 : index
      %c0_4 = arith.constant 0 : index
      %c0_5 = arith.constant 0 : index
      %8 = vector.load %arg3[%c0, %c0_3, %c0_4, %c0_5] : memref<1x4x2x128xf32, #tpu.memory_space<vmem>>, vector<1x4x2x128xf32>
      %c0_6 = arith.constant 0 : index
      %c0_7 = arith.constant 0 : index
      %c0_8 = arith.constant 0 : index
      %c0_9 = arith.constant 0 : index
      %9 = vector.load %arg4[%c0_6, %c0_7, %c0_8, %c0_9] : memref<1x4x2x128xf32, #tpu.memory_space<vmem>>, vector<1x4x2x128xf32>
      tpu.vector_store %arg4[%c0_6, %c0_7, %c0_8, %c0_9], %8 {strides = array<i32>} : memref<1x4x2x128xf32, #tpu.memory_space<vmem>>, vector<1x4x2x128xf32>,
    } else {
    }
    %c0_i32_1 = arith.constant 0 : i32
    %5 = arith.cmpi ne, %1, %c0_i32_1 : i32
    %6 = arith.extui %5 : i1 to i32
    %c0_i32_2 = arith.constant 0 : i32
    %7 = arith.cmpi ne, %6, %c0_i32_2 : i32
    scf.if %7 {
      %c0 = arith.constant 0 : index
      %c0_3 = arith.constant 0 : index
      %c0_4 = arith.constant 0 : index
      %c0_5 = arith.constant 0 : index
      %8 = vector.load %arg3[%c0, %c0_3, %c0_4, %c0_5] : memref<1x4x2x128xf32, #tpu.memory_space<vmem>>, vector<1x4x2x128xf32>
      %9 = vector.shape_cast %8 : vector<1x4x2x128xf32> to vector<4x2x128xf32>
      %10 = vector.extract_strided_slice %9 {offsets = [0, 0, 0], sizes = [4, 1, 128], strides = [1, 1, 1]} : vector<4x2x128xf32> to vector<4x1x128xf32>
      %11 = vector.shape_cast %10 : vector<4x1x128xf32> to vector<4x128xf32>
      %c0_6 = arith.constant 0 : index
      %c0_7 = arith.constant 0 : index
      %c0_8 = arith.constant 0 : index
      %c0_9 = arith.constant 0 : index
      %12 = vector.load %arg2[%c0_6, %c0_7, %c0_8, %c0_9] : memref<2x2x128x128xf32, #tpu.memory_space<vmem>>, vector<1x1x128x128xf32>
      %13 = vector.shape_cast %12 : vector<1x1x128x128xf32> to vector<128x128xf32>
      %cst = arith.constant dense<0.000000e+00> : vector<4x128xf32>
      %14 = tpu.matmul %11, %13, %cst {dimension_numbers = #tpu.dot_dimension_numbers<[1], [0], [0], [1], [0, 0, 1, 1], [], []>} : vector<4x128xf32>, vector<128x128xf32>, vector<4x128xf32> -> vector<4x128xf32>
      %15 = vector.extract_strided_slice %9 {offsets = [0, 1, 0], sizes = [4, 1, 128], strides = [1, 1, 1]} : vector<4x2x128xf32> to vector<4x1x128xf32>
      %16 = vector.shape_cast %15 : vector<4x1x128xf32> to vector<4x128xf32>
      %c0_10 = arith.constant 0 : index
      %c1 = arith.constant 1 : index
      %c0_11 = arith.constant 0 : index
      %c0_12 = arith.constant 0 : index
      %17 = vector.load %arg2[%c0_10, %c1, %c0_11, %c0_12] : memref<2x2x128x128xf32, #tpu.memory_space<vmem>>, vector<1x1x128x128xf32>
      %18 = vector.shape_cast %17 : vector<1x1x128x128xf32> to vector<128x128xf32>
      %cst_13 = arith.constant dense<0.000000e+00> : vector<4x128xf32>
      %19 = tpu.matmul %16, %18, %cst_13 {dimension_numbers = #tpu.dot_dimension_numbers<[1], [0], [0], [1], [0, 0, 1, 1], [], []>} : vector<4x128xf32>, vector<128x128xf32>, vector<4x128xf32> -> vector<4x128xf32>
      %20 = arith.addf %14, %19 : vector<4x128xf32>
      %c0_14 = arith.constant 0 : index
      %c0_15 = arith.constant 0 : index
      %c0_16 = arith.constant 0 : index
      %c0_17 = arith.constant 0 : index
      %21 = vector.load %arg4[%c0_14, %c0_15, %c0_16, %c0_17] : memref<1x4x2x128xf32, #tpu.memory_space<vmem>>, vector<1x4x1x128xf32>
      %22 = vector.shape_cast %21 : vector<1x4x1x128xf32> to vector<4x128xf32>
      %23 = vector.shape_cast %20 : vector<4x128xf32> to vector<1x4x1x128xf32>
      tpu.vector_store %arg4[%c0_14, %c0_15, %c0_16, %c0_17], %23 {strides = array<i32>} : memref<1x4x2x128xf32, #tpu.memory_space<vmem>>, vector<1x4x1x128xf32>,
      %24 = vector.extract_strided_slice %9 {offsets = [0, 0, 0], sizes = [4, 1, 128], strides = [1, 1, 1]} : vector<4x2x128xf32> to vector<4x1x128xf32>
      %25 = vector.shape_cast %24 : vector<4x1x128xf32> to vector<4x128xf32>
      %c1_18 = arith.constant 1 : index
      %c0_19 = arith.constant 0 : index
      %c0_20 = arith.constant 0 : index
      %c0_21 = arith.constant 0 : index
      %26 = vector.load %arg2[%c1_18, %c0_19, %c0_20, %c0_21] : memref<2x2x128x128xf32, #tpu.memory_space<vmem>>, vector<1x1x128x128xf32>
      %27 = vector.shape_cast %26 : vector<1x1x128x128xf32> to vector<128x128xf32>
      %cst_22 = arith.constant dense<0.000000e+00> : vector<4x128xf32>
      %28 = tpu.matmul %25, %27, %cst_22 {dimension_numbers = #tpu.dot_dimension_numbers<[1], [0], [0], [1], [0, 0, 1, 1], [], []>} : vector<4x128xf32>, vector<128x128xf32>, vector<4x128xf32> -> vector<4x128xf32>
      %29 = vector.extract_strided_slice %9 {offsets = [0, 1, 0], sizes = [4, 1, 128], strides = [1, 1, 1]} : vector<4x2x128xf32> to vector<4x1x128xf32>
      %30 = vector.shape_cast %29 : vector<4x1x128xf32> to vector<4x128xf32>
      %c1_23 = arith.constant 1 : index
      %c1_24 = arith.constant 1 : index
      %c0_25 = arith.constant 0 : index
      %c0_26 = arith.constant 0 : index
      %31 = vector.load %arg2[%c1_23, %c1_24, %c0_25, %c0_26] : memref<2x2x128x128xf32, #tpu.memory_space<vmem>>, vector<1x1x128x128xf32>
      %32 = vector.shape_cast %31 : vector<1x1x128x128xf32> to vector<128x128xf32>
      %cst_27 = arith.constant dense<0.000000e+00> : vector<4x128xf32>
      %33 = tpu.matmul %30, %32, %cst_27 {dimension_numbers = #tpu.dot_dimension_numbers<[1], [0], [0], [1], [0, 0, 1, 1], [], []>} : vector<4x128xf32>, vector<128x128xf32>, vector<4x128xf32> -> vector<4x128xf32>
      %34 = arith.addf %28, %33 : vector<4x128xf32>
      %c0_28 = arith.constant 0 : index
      %c0_29 = arith.constant 0 : index
      %c1_30 = arith.constant 1 : index
      %c0_31 = arith.constant 0 : index
      %35 = vector.load %arg4[%c0_28, %c0_29, %c1_30, %c0_31] : memref<1x4x2x128xf32, #tpu.memory_space<vmem>>, vector<1x4x1x128xf32>
      %36 = vector.shape_cast %35 : vector<1x4x1x128xf32> to vector<4x128xf32>
      %37 = vector.shape_cast %34 : vector<4x128xf32> to vector<1x4x1x128xf32>
      tpu.vector_store %arg4[%c0_28, %c0_29, %c1_30, %c0_31], %37 {strides = array<i32>} : memref<1x4x2x128xf32, #tpu.memory_space<vmem>>, vector<1x4x1x128xf32>,
    } else {
    }
    return
  }
  func.func @transform_0(%arg0: i32, %arg1: memref<2xi32, #tpu.memory_space<smem>>) -> (i32, i32, i32, i32) {
    %c0_i32 = arith.constant 0 : i32
    %c0_i32_0 = arith.constant 0 : i32
    %c0_i32_1 = arith.constant 0 : i32
    %c0_i32_2 = arith.constant 0 : i32
    %c0_i32_3 = arith.constant 0 : i32
    return %c0_i32, %c0_i32_0, %c0_i32_1, %c0_i32_2 : i32, i32, i32, i32
  }
  func.func @transform_1(%arg0: i32, %arg1: memref<2xi32, #tpu.memory_space<smem>>) -> (i32, i32, i32, i32) {
    %c0_i32 = arith.constant 0 : i32
    %c0_i32_0 = arith.constant 0 : i32
    %c0_i32_1 = arith.constant 0 : i32
    %c0_i32_2 = arith.constant 0 : i32
    return %arg0, %c0_i32, %c0_i32_0, %c0_i32_1 : i32, i32, i32, i32
  }
  func.func @transform_2(%arg0: i32, %arg1: memref<2xi32, #tpu.memory_space<smem>>) -> (i32, i32, i32, i32) {
    %c0_i32 = arith.constant 0 : i32
    %c0_i32_0 = arith.constant 0 : i32
    %c0_i32_1 = arith.constant 0 : i32
    %c0_i32_2 = arith.constant 0 : i32
    return %arg0, %c0_i32, %c0_i32_0, %c0_i32_1 : i32, i32, i32, i32
  }
}

</mosaic_0001>

<llo_original>
// kernel: tpu_custom_call.1
$region0: #{tpu_custom_call.1}
  #allocation0 [shape = 'u32[]', space=smem, size = 0x4, offset = 0x4, fixed_abs, tag = 'smem constant byte address 0x4 - core index']
  #allocation1 [shape = 'u32[72,128]{1,0:T(1,128)}', space=vmem, size = 0x9000, scoped, tag = 'internal scratch']
  #allocation2 [shape = 's32[1]{0}', space=sflag, size = 0x4, scoped, tag = 'scoped memory for tpu_custom_call.1']
  #allocation3 [shape = 'u8[512]{0}', space=smem, size = 0x200, scoped, tag = 'prefetched SMEM operand 0']
  %s0 = inlined_call_operand.hbm [shape: s32[2], index: 0, kind: input, shape index: {}]
  %s1 = inlined_call_operand.hbm [shape: f32[2,2,128,128], index: 1, kind: input, shape index: {}]
  %s2 = inlined_call_operand.hbm [shape: f32[2,4,2,128], index: 2, kind: input, shape index: {}]
  %s3 = inlined_call_operand.hbm [shape: f32[2,4,2,128], index: 3, kind: output, shape index: {}]
  %s4 = sld [smem:[#allocation0]]
  $region57: #{tpu_custom_call.1} parent=0
    _
  %s6 = ssub.s32 1, %s4
  %s7 = scalar_select 0, %s6, %s4
  %s9 = sshll.u32 %s0, 4
  %s10 = int_to_ptr.hbm [resolvable:$true] %s9
  %12 = dma.hbm_to_smem %s10, 16, [#allocation3], [#allocation2]
  %14 = dma.done [#allocation2], 16
  %15 = sfence
  $region1: #{tpu_custom_call.1} parent=0
    #allocation4 [shape = 'u8[262144]{0}', space=vmem, size = 0x40000, scoped, tag = 'input window, operand 1, single buffered']
    #allocation5 [shape = 's32[2]{0}', space=sflag, size = 0x8, scoped, tag = 'scoped memory for tpu_custom_call.1']
    #allocation6 [shape = 's32[2]{0}', space=sflag, size = 0x8, scoped, tag = 'scoped memory for tpu_custom_call.1']
    #allocation7 [shape = 'u8[8192]{0}', space=vmem, size = 0x2000, scoped, tag = 'input window, operand 2']
    #allocation8 [shape = 's32[2]{0}', space=sflag, size = 0x8, scoped, tag = 'scoped memory for tpu_custom_call.1']
    #allocation9 [shape = 'u8[8192]{0}', space=vmem, size = 0x2000, scoped, tag = 'output window, operand 0']
    %16 = vsyncpa [#allocation5], 0
    %17 = vsyncpa [#allocation8], 0
    %s18 = scalar_lea.sflag [#allocation8], 1
    %19 = vsyncpa %s18, 0
    %20 = vsyncpa [#allocation6], 0
    %s21 = scalar_lea.sflag [#allocation6], 1
    %22 = vsyncpa %s21, 0
    loop: start=0, step=1, limit=4
    $region2: #{tpu_custom_call.1} parent=1 // loop_pre_header
      _
    $region3: #{tpu_custom_call.1} parent=1 // loop_header
      %s24 = sphi 0, %s28
      %p25 = scmp.ge.s32.totalorder %s24, 4
      %s32 = sphi 0, %s32
      %s34 = sphi 0, %s32
      %s35 = sphi 0, %s34
      %s49 = sphi 0, %s35
      %s55 = sphi 0, %s57
      %s58 = sphi 0, %s55
      %s59 = sphi 0, %s58
      %s75 = sphi 0, %s59
      %s81 = sphi 0, %s83
      %s84 = sphi 0, %s81
      %s85 = sphi 0, %s84
      %s101 = sphi 0, %s85
    $region4: #{tpu_custom_call.1} parent=1 // loop_header_branch
      %27 = sbr.rel (%p25) target = $region8
    $region5: #{tpu_custom_call.1} parent=1 // loop_body
      %s29 = ssub.s32 %s24, 1
      %s30 = ssub.s32 %s24, 2
      %s31 = sadd.s32 %s24, 1
      %s33 = sadd.s32 %s32, 1
      %p36 = scmp.eq.s32.totalorder %s24, 1
      %p37 = scmp.ne.s32.totalorder %s32, %s34
      %p38 = scmp.eq.s32.totalorder %s24, 0
      %p39 = por %p37, %p38
      %p40 = scmp.ne.s32.totalorder %s32, %s34
      %p41 = scmp.eq.s32.totalorder %s29, 1
      %p42 = por %p40, %p41
      %p43 = scmp.ne.s32.totalorder %s34, %s35
      %p44 = scmp.eq.s32.totalorder %s29, 0
      %p45 = por %p43, %p44
      %p46 = scmp.ne.s32.totalorder %s34, %s35
      %p47 = scmp.eq.s32.totalorder %s30, 1
      %p48 = por %p46, %p47
      %p50 = scmp.ne.s32.totalorder %s35, %s49
      %p51 = scmp.eq.s32.totalorder %s30, 0
      %p52 = por %p50, %p51
      %s53 = ssub.s32 %s24, %s31
      %p54 = scmp.eq.s32.totalorder %s53, 0
      %s56 = sadd.s32 %s55, 1
      %s57 = scalar_select %p54, %s55, %s56
      %p60 = pneg %p54
      %p61 = scmp.eq.s32.totalorder %s24, 1
      %p62 = por %p60, %p61
      %p63 = scmp.ne.s32.totalorder %s55, %s58
      %p64 = scmp.eq.s32.totalorder %s24, 0
      %p65 = por %p63, %p64
      %p66 = scmp.ne.s32.totalorder %s55, %s58
      %p67 = scmp.eq.s32.totalorder %s29, 1
      %p68 = por %p66, %p67
      %p69 = scmp.ne.s32.totalorder %s58, %s59
      %p70 = scmp.eq.s32.totalorder %s29, 0
      %p71 = por %p69, %p70
      %p72 = scmp.ne.s32.totalorder %s58, %s59
      %p73 = scmp.eq.s32.totalorder %s30, 1
      %p74 = por %p72, %p73
      %p76 = scmp.ne.s32.totalorder %s59, %s75
      %p77 = scmp.eq.s32.totalorder %s30, 0
      %p78 = por %p76, %p77
      %s79 = ssub.s32 %s24, %s31
      %p80 = scmp.eq.s32.totalorder %s79, 0
      %s82 = sadd.s32 %s81, 1
      %s83 = scalar_select %p80, %s81, %s82
      %p86 = pneg %p80
      %p87 = scmp.eq.s32.totalorder %s24, 1
      %p88 = por %p86, %p87
      %p89 = scmp.ne.s32.totalorder %s81, %s84
      %p90 = scmp.eq.s32.totalorder %s24, 0
      %p91 = por %p89, %p90
      %p92 = scmp.ne.s32.totalorder %s81, %s84
      %p93 = scmp.eq.s32.totalorder %s29, 1
      %p94 = por %p92, %p93
      %p95 = scmp.ne.s32.totalorder %s84, %s85
      %p96 = scmp.eq.s32.totalorder %s29, 0
      %p97 = por %p95, %p96
      %p98 = scmp.ne.s32.totalorder %s84, %s85
      %p99 = scmp.eq.s32.totalorder %s30, 1
      %p100 = por %p98, %p99
      %p102 = scmp.ne.s32.totalorder %s85, %s101
      %p103 = scmp.eq.s32.totalorder %s30, 0
      %p104 = por %p102, %p103
      %p105 = scmp.le.s32.totalorder 1, %s24
      %p106 = scmp.lt.s32.totalorder %s24, 3
      %p107 = pnand %p105, %p106
      %p108 = pneg %p107
      // Predicated region
      $region9: #{tpu_custom_call.1} parent=5 // pred_check
        _
      $region10: #{tpu_custom_call.1} parent=5 // pred_check_branch
        %110 = sbr.rel (%p107) target = $region12
      $region11: #{tpu_custom_call.1} parent=5 // pred_region
        %s111 = ssub.s32 %s24, 1
        // Predicated region
        $region13: #{tpu_custom_call.1} parent=11 // pred_check
          %p112 = pneg %p45
        $region14: #{tpu_custom_call.1} parent=11 // pred_check_branch
          %114 = sbr.rel (%p112) target = $region16
        $region15: #{tpu_custom_call.1} parent=11 // pred_region
          %116 = vsyncadd [#allocation5], 0
          %s117 = sshll.u32 %s1, 4
          %s118 = int_to_ptr.hbm [resolvable:$true] %s117
          %s119 = sshll.u32 [#allocation4], 4
          %s120 = int_to_ptr.vmem [resolvable:$true] %s119
          %125 = dma.hbm_to_vmem [thread:$0]  %s118, 8192, %s120, [#allocation5], 128, 128, 8
        $region16: #{tpu_custom_call.1} parent=11 // pred_fallthru
          _
      $region12: #{tpu_custom_call.1} parent=5 // pred_fallthru
        _
      %p126 = scmp.lt.s32.totalorder %s24, 2
      // Predicated region
      $region17: #{tpu_custom_call.1} parent=5 // pred_check
        %p127 = pneg %p126
      $region18: #{tpu_custom_call.1} parent=5 // pred_check_branch
        %129 = sbr.rel (%p127) target = $region20
      $region19: #{tpu_custom_call.1} parent=5 // pred_region
        // Predicated region
        $region21: #{tpu_custom_call.1} parent=19 // pred_check
          %p130 = pneg %p65
        $region22: #{tpu_custom_call.1} parent=19 // pred_check_branch
          %132 = sbr.rel (%p130) target = $region24
        $region23: #{tpu_custom_call.1} parent=19 // pred_region
          %s133 = sand.u32 %s55, 1
          %s134 = scalar_lea.sflag [#allocation8], %s133
          %s135 = sand.u32 %s55, 1
          %s136 = smul.addr %s135, 8
          %s137 = scalar_lea.vmem [#allocation7], %s136
          %139 = vsyncadd %s134, 0
          %s140 = smul.addr %s24, 4
          %s141 = smul.addr %s140, 2
          %s142 = scalar_lea.hbm %s2, %s141
          %s143 = sshll.u32 %s142, 4
          %s144 = int_to_ptr.hbm [resolvable:$true] %s143
          %s145 = sshll.u32 %s137, 4
          %s146 = int_to_ptr.vmem [resolvable:$true] %s145
          %151 = dma.hbm_to_vmem [thread:$0]  %s144, 128, %s146, %s134, 32, 32, 2
        $region24: #{tpu_custom_call.1} parent=19 // pred_fallthru
          _
      $region20: #{tpu_custom_call.1} parent=5 // pred_fallthru
        _
      %p152 = scmp.le.s32.totalorder 1, %s24
      %p153 = scmp.lt.s32.totalorder %s24, 3
      %p154 = pnand %p152, %p153
      %p155 = pneg %p154
      // Predicated region
      $region25: #{tpu_custom_call.1} parent=5 // pred_check
        _
      $region26: #{tpu_custom_call.1} parent=5 // pred_check_branch
        %157 = sbr.rel (%p154) target = $region28
      $region27: #{tpu_custom_call.1} parent=5 // pred_region
        %s158 = ssub.s32 %s24, 1
        // Predicated region
        $region29: #{tpu_custom_call.1} parent=27 // pred_check
          %p159 = pneg %p45
        $region30: #{tpu_custom_call.1} parent=27 // pred_check_branch
          %161 = sbr.rel (%p159) target = $region32
        $region31: #{tpu_custom_call.1} parent=27 // pred_region
          %163 = dma.done [#allocation5], 8192
        $region32: #{tpu_custom_call.1} parent=27 // pred_fallthru
          _
        %s164 = sand.u32 %s58, 1
        %s165 = scalar_lea.sflag [#allocation8], %s164
        %s166 = sand.u32 %s58, 1
        %s167 = smul.addr %s166, 8
        %s168 = scalar_lea.vmem [#allocation7], %s167
        // Predicated region
        $region33: #{tpu_custom_call.1} parent=27 // pred_check
          %p169 = pneg %p71
        $region34: #{tpu_custom_call.1} parent=27 // pred_check_branch
          %171 = sbr.rel (%p169) target = $region36
        $region35: #{tpu_custom_call.1} parent=27 // pred_region
          %173 = dma.done %s165, 128
        $region36: #{tpu_custom_call.1} parent=27 // pred_fallthru
          _
        %p174 = pneg %p45
        %p175 = pneg %p42
        %s176 = sand.u32 %s58, 1
        %s177 = scalar_lea.sflag [#allocation8], %s176
        %s178 = sand.u32 %s58, 1
        %s179 = smul.addr %s178, 8
        %s180 = scalar_lea.vmem [#allocation7], %s179
        %p181 = pneg %p71
        %p182 = pneg %p68
        %p183 = pneg %p97
        %p184 = pneg %p94
        %s185 = sand.u32 %s84, 1
        %s186 = scalar_lea.sflag [#allocation6], %s185
        %s187 = sand.u32 %s84, 1
        %s188 = smul.addr %s187, 8
        %s189 = scalar_lea.vmem [#allocation9], %s188
        %s190 = sld [smem:[#allocation3 + %s29]]
        %p191 = scmp.eq.s32.totalorder %s190, 0
        // Predicated region
        $region37: #{tpu_custom_call.1} parent=27 // pred_check
          %p192 = pneg %p191
        $region38: #{tpu_custom_call.1} parent=27 // pred_check_branch
          %194 = sbr.rel (%p192) target = $region40
        $region39: #{tpu_custom_call.1} parent=27 // pred_region
          %v195 = vld [vmem:[%s168] sm:$0x3]
          %v196 = vld [vmem:[%s168 + $0x2] sm:$0x3]
          %v197 = vld [vmem:[%s168 + $0x4] sm:$0x3]
          %v198 = vld [vmem:[%s168 + $0x6] sm:$0x3]
          %199 = vst [vmem:[%s189] sm:$0x3] %v195
          %200 = vst [vmem:[%s189 + $0x2] sm:$0x3] %v196
          %201 = vst [vmem:[%s189 + $0x4] sm:$0x3] %v197
          %202 = vst [vmem:[%s189 + $0x6] sm:$0x3] %v198
        $region40: #{tpu_custom_call.1} parent=27 // pred_fallthru
          _
        %p203 = scmp.ne.s32.totalorder %s190, 0
        // Predicated region
        $region41: #{tpu_custom_call.1} parent=27 // pred_check
          %p204 = pneg %p203
        $region42: #{tpu_custom_call.1} parent=27 // pred_check_branch
          %206 = sbr.rel (%p204) target = $region44
        $region43: #{tpu_custom_call.1} parent=27 // pred_region
          %v207 = vld [vmem:[%s168] sm:$0x3]
          %v208 = vld [vmem:[%s168 + $0x2] sm:$0x3]
          %v209 = vld [vmem:[%s168 + $0x4] sm:$0x3]
          %v210 = vld [vmem:[%s168 + $0x6] sm:$0x3]
          %v211 = vld [vmem:[#allocation4] sm:$0xff]
          %v212 = vld [vmem:[#allocation4 + $0x8] sm:$0xff]
          %v213 = vld [vmem:[#allocation4 + $0x10] sm:$0xff]
          %v214 = vld [vmem:[#allocation4 + $0x18] sm:$0xff]
          %v215 = vld [vmem:[#allocation4 + $0x20] sm:$0xff]
          %v216 = vld [vmem:[#allocation4 + $0x28] sm:$0xff]
          %v217 = vld [vmem:[#allocation4 + $0x30] sm:$0xff]
          %v218 = vld [vmem:[#allocation4 + $0x38] sm:$0xff]
          %v219 = vld [vmem:[#allocation4 + $0x40] sm:$0xff]
          %v220 = vld [vmem:[#allocation4 + $0x48] sm:$0xff]
          %v221 = vld [vmem:[#allocation4 + $0x50] sm:$0xff]
          %v222 = vld [vmem:[#allocation4 + $0x58] sm:$0xff]
          %v223 = vld [vmem:[#allocation4 + $0x60] sm:$0xff]
          %v224 = vld [vmem:[#allocation4 + $0x68] sm:$0xff]
          %v225 = vld [vmem:[#allocation4 + $0x70] sm:$0xff]
          %v226 = vld [vmem:[#allocation4 + $0x78] sm:$0xff]
          %s227 = scalar_lea.vmem [#allocation4], 128
          %v228 = vld [vmem:[%s227] sm:$0xff]
          %v229 = vld [vmem:[%s227 + $0x8] sm:$0xff]
          %v230 = vld [vmem:[%s227 + $0x10] sm:$0xff]
          %v231 = vld [vmem:[%s227 + $0x18] sm:$0xff]
          %v232 = vld [vmem:[%s227 + $0x20] sm:$0xff]
          %v233 = vld [vmem:[%s227 + $0x28] sm:$0xff]
          %v234 = vld [vmem:[%s227 + $0x30] sm:$0xff]
          %v235 = vld [vmem:[%s227 + $0x38] sm:$0xff]
          %v236 = vld [vmem:[%s227 + $0x40] sm:$0xff]
          %v237 = vld [vmem:[%s227 + $0x48] sm:$0xff]
          %v238 = vld [vmem:[%s227 + $0x50] sm:$0xff]
          %v239 = vld [vmem:[%s227 + $0x58] sm:$0xff]
          %v240 = vld [vmem:[%s227 + $0x60] sm:$0xff]
          %v241 = vld [vmem:[%s227 + $0x68] sm:$0xff]
          %v242 = vld [vmem:[%s227 + $0x70] sm:$0xff]
          %v243 = vld [vmem:[%s227 + $0x78] sm:$0xff]
          %v248 = vrot.slane %v207, 1
          %vm249 = vcmask 1041409
          %v250 = vsel %vm249, %v208, %v248
          %v251 = vrot.slane %v209, 7
          %vm252 = vcmask 1042434
          %v253 = vsel %vm252, %v251, %v250
          %v254 = vrot.slane %v210, 6
          %vm255 = vcmask 1043459
          %v256 = vsel %vm255, %v254, %v253
          %258 = vmatpush.msra.mxu0 %v243
          %259 = vmatpush.msra.mxu0 %v242
          %260 = vmatpush.msra.mxu0 %v241
          %261 = vmatpush.msra.mxu0 %v240
          %262 = vmatpush.msra.mxu0 %v239
          %263 = vmatpush.msra.mxu0 %v238
          %264 = vmatpush.msra.mxu0 %v237
          %265 = vmatpush.msra.mxu0 %v236
          %266 = vmatpush.msra.mxu0 %v235
          %267 = vmatpush.msra.mxu0 %v234
          %268 = vmatpush.msra.mxu0 %v233
          %269 = vmatpush.msra.mxu0 %v232
          %270 = vmatpush.msra.mxu0 %v231
          %271 = vmatpush.msra.mxu0 %v230
          %272 = vmatpush.msra.mxu0 %v229
          %273 = vmatpush.msra.mxu0 %v228
          %274 = vmatmul.f32.gmra.mxu0 %v256
          %v275 = vpop.f32.mrf.mxu0
          %v276 = vadd.f32 0.0, %v275
          %277 = vdwg.mxu0
          %v278 = vrot.slane %v208, 7
          %v279 = vsel %vm249, %v278, %v207
          %v280 = vrot.slane %v209, 6
          %v281 = vsel %vm252, %v280, %v279
          %v282 = vrot.slane %v210, 5
          %v283 = vsel %vm255, %v282, %v281
          %285 = vmatpush.msra.mxu0 %v226
          %286 = vmatpush.msra.mxu0 %v225
          %287 = vmatpush.msra.mxu0 %v224
          %288 = vmatpush.msra.mxu0 %v223
          %289 = vmatpush.msra.mxu0 %v222
          %290 = vmatpush.msra.mxu0 %v221
          %291 = vmatpush.msra.mxu0 %v220
          %292 = vmatpush.msra.mxu0 %v219
          %293 = vmatpush.msra.mxu0 %v218
          %294 = vmatpush.msra.mxu0 %v217
          %295 = vmatpush.msra.mxu0 %v216
          %296 = vmatpush.msra.mxu0 %v215
          %297 = vmatpush.msra.mxu0 %v214
          %298 = vmatpush.msra.mxu0 %v213
          %299 = vmatpush.msra.mxu0 %v212
          %300 = vmatpush.msra.mxu0 %v211
          %301 = vmatmul.f32.gmra.mxu0 %v283
          %v302 = vpop.f32.mrf.mxu0
          %v303 = vadd.f32 %v276, %v302
          %304 = vdwg.mxu0
          %v306 = vrot.slane %v303, 1
          %v307 = vrot.slane %v303, 2
          %v308 = vrot.slane %v303, 3
          %312 = vst [vmem:[%s189] sm:$0x1] %v303
          %313 = vst [vmem:[%s189 + $0x2] sm:$0x1] %v306
          %314 = vst [vmem:[%s189 + $0x4] sm:$0x1] %v307
          %315 = vst [vmem:[%s189 + $0x6] sm:$0x1] %v308
          %s316 = scalar_lea.vmem [#allocation4], 256
          %v317 = vld [vmem:[%s316] sm:$0xff]
          %v318 = vld [vmem:[%s316 + $0x8] sm:$0xff]
          %v319 = vld [vmem:[%s316 + $0x10] sm:$0xff]
          %v320 = vld [vmem:[%s316 + $0x18] sm:$0xff]
          %v321 = vld [vmem:[%s316 + $0x20] sm:$0xff]
          %v322 = vld [vmem:[%s316 + $0x28] sm:$0xff]
          %v323 = vld [vmem:[%s316 + $0x30] sm:$0xff]
          %v324 = vld [vmem:[%s316 + $0x38] sm:$0xff]
          %v325 = vld [vmem:[%s316 + $0x40] sm:$0xff]
          %v326 = vld [vmem:[%s316 + $0x48] sm:$0xff]
          %v327 = vld [vmem:[%s316 + $0x50] sm:$0xff]
          %v328 = vld [vmem:[%s316 + $0x58] sm:$0xff]
          %v329 = vld [vmem:[%s316 + $0x60] sm:$0xff]
          %v330 = vld [vmem:[%s316 + $0x68] sm:$0xff]
          %v331 = vld [vmem:[%s316 + $0x70] sm:$0xff]
          %v332 = vld [vmem:[%s316 + $0x78] sm:$0xff]
          %s333 = scalar_lea.vmem [#allocation4], 384
          %v334 = vld [vmem:[%s333] sm:$0xff]
          %v335 = vld [vmem:[%s333 + $0x8] sm:$0xff]
          %v336 = vld [vmem:[%s333 + $0x10] sm:$0xff]
          %v337 = vld [vmem:[%s333 + $0x18] sm:$0xff]
          %v338 = vld [vmem:[%s333 + $0x20] sm:$0xff]
          %v339 = vld [vmem:[%s333 + $0x28] sm:$0xff]
          %v340 = vld [vmem:[%s333 + $0x30] sm:$0xff]
          %v341 = vld [vmem:[%s333 + $0x38] sm:$0xff]
          %v342 = vld [vmem:[%s333 + $0x40] sm:$0xff]
          %v343 = vld [vmem:[%s333 + $0x48] sm:$0xff]
          %v344 = vld [vmem:[%s333 + $0x50] sm:$0xff]
          %v345 = vld [vmem:[%s333 + $0x58] sm:$0xff]
          %v346 = vld [vmem:[%s333 + $0x60] sm:$0xff]
          %v347 = vld [vmem:[%s333 + $0x68] sm:$0xff]
          %v348 = vld [vmem:[%s333 + $0x70] sm:$0xff]
          %v349 = vld [vmem:[%s333 + $0x78] sm:$0xff]
          %350 = vmatpush.msra.mxu0 %v349
          %351 = vmatpush.msra.mxu0 %v348
          %352 = vmatpush.msra.mxu0 %v347
          %353 = vmatpush.msra.mxu0 %v346
          %354 = vmatpush.msra.mxu0 %v345
          %355 = vmatpush.msra.mxu0 %v344
          %356 = vmatpush.msra.mxu0 %v343
          %357 = vmatpush.msra.mxu0 %v342
          %358 = vmatpush.msra.mxu0 %v341
          %359 = vmatpush.msra.mxu0 %v340
          %360 = vmatpush.msra.mxu0 %v339
          %361 = vmatpush.msra.mxu0 %v338
          %362 = vmatpush.msra.mxu0 %v337
          %363 = vmatpush.msra.mxu0 %v336
          %364 = vmatpush.msra.mxu0 %v335
          %365 = vmatpush.msra.mxu0 %v334
          %366 = vmatmul.f32.gmra.mxu0 %v256
          %v367 = vpop.f32.mrf.mxu0
          %v368 = vadd.f32 0.0, %v367
          %369 = vdwg.mxu0
          %370 = vmatpush.msra.mxu0 %v332
          %371 = vmatpush.msra.mxu0 %v331
          %372 = vmatpush.msra.mxu0 %v330
          %373 = vmatpush.msra.mxu0 %v329
          %374 = vmatpush.msra.mxu0 %v328
          %375 = vmatpush.msra.mxu0 %v327
          %376 = vmatpush.msra.mxu0 %v326
          %377 = vmatpush.msra.mxu0 %v325
          %378 = vmatpush.msra.mxu0 %v324
          %379 = vmatpush.msra.mxu0 %v323
          %380 = vmatpush.msra.mxu0 %v322
          %381 = vmatpush.msra.mxu0 %v321
          %382 = vmatpush.msra.mxu0 %v320
          %383 = vmatpush.msra.mxu0 %v319
          %384 = vmatpush.msra.mxu0 %v318
          %385 = vmatpush.msra.mxu0 %v317
          %386 = vmatmul.f32.gmra.mxu0 %v283
          %v387 = vpop.f32.mrf.mxu0
          %v388 = vadd.f32 %v368, %v387
          %389 = vdwg.mxu0
          %v391 = vrot.slane %v388, 1
          %v392 = vrot.slane %v388, 2
          %v393 = vrot.slane %v388, 3
          %397 = vst [vmem:[%s189 + $0x1] sm:$0x1] %v388
          %398 = vst [vmem:[%s189 + $0x3] sm:$0x1] %v391
          %399 = vst [vmem:[%s189 + $0x5] sm:$0x1] %v392
          %400 = vst [vmem:[%s189 + $0x7] sm:$0x1] %v393
        $region44: #{tpu_custom_call.1} parent=27 // pred_fallthru
          _
        %s401 = sand.u32 %s84, 1
        %s402 = scalar_lea.sflag [#allocation6], %s401
        %s403 = sand.u32 %s84, 1
        %s404 = smul.addr %s403, 8
        %s405 = scalar_lea.vmem [#allocation9], %s404
        // Predicated region
        $region45: #{tpu_custom_call.1} parent=27 // pred_check
          %p406 = pneg %p94
        $region46: #{tpu_custom_call.1} parent=27 // pred_check_branch
          %408 = sbr.rel (%p406) target = $region48
        $region47: #{tpu_custom_call.1} parent=27 // pred_region
          %410 = vsyncadd %s402, 0
          %s411 = smul.addr %s29, 4
          %s412 = smul.addr %s411, 2
          %s413 = scalar_lea.hbm %s3, %s412
          %s414 = sshll.u32 %s405, 4
          %s415 = int_to_ptr.vmem [resolvable:$true] %s414
          %s416 = sshll.u32 %s413, 4
          %s417 = int_to_ptr.hbm [resolvable:$true] %s416
          %422 = dma.vmem_to_hbm [thread:$0]  %s415, 128, %s417, %s402, 32, 32, 2
        $region48: #{tpu_custom_call.1} parent=27 // pred_fallthru
          _
      $region28: #{tpu_custom_call.1} parent=5 // pred_fallthru
        _
      %p423 = scmp.le.s32.totalorder 2, %s24
      // Predicated region
      $region49: #{tpu_custom_call.1} parent=5 // pred_check
        %p424 = pneg %p423
      $region50: #{tpu_custom_call.1} parent=5 // pred_check_branch
        %426 = sbr.rel (%p424) target = $region52
      $region51: #{tpu_custom_call.1} parent=5 // pred_region
        %s427 = ssub.s32 %s24, 2
        // Predicated region
        $region53: #{tpu_custom_call.1} parent=51 // pred_check
          %p428 = pneg %p100
        $region54: #{tpu_custom_call.1} parent=51 // pred_check_branch
          %430 = sbr.rel (%p428) target = $region56
        $region55: #{tpu_custom_call.1} parent=51 // pred_region
          %s431 = sand.u32 %s85, 1
          %s432 = scalar_lea.sflag [#allocation6], %s431
          %s433 = sand.u32 %s85, 1
          %s434 = smul.addr %s433, 8
          %s435 = scalar_lea.vmem [#allocation9], %s434
          %437 = dma.done %s432, 128
        $region56: #{tpu_custom_call.1} parent=51 // pred_fallthru
          _
      $region52: #{tpu_custom_call.1} parent=5 // pred_fallthru
        _
    $region6: #{tpu_custom_call.1} parent=1 // loop_footer
      %s28 = sadd.s32 1, %s24
    $region7: #{tpu_custom_call.1} parent=1 // loop_footer_branch
      %23 = sbr.rel target = $region3
    $region8: #{tpu_custom_call.1} parent=1 // loop_exit
      _
    %438 = vsyncpa [#allocation5], 1
    %s439 = scalar_lea.sflag [#allocation5], 1
    %440 = vsyncpa %s439, 1
    %441 = vsyncpa [#allocation8], 1
    %s442 = scalar_lea.sflag [#allocation8], 1
    %443 = vsyncpa %s442, 1
    %444 = vsyncpa [#allocation6], 1
    %s445 = scalar_lea.sflag [#allocation6], 1
    %446 = vsyncpa %s445, 1

</llo_original>
